<compile_context>
chip_gen: v7x
topology: tpu7x:2x2x1
jax: 0.10.0
libtpu: 0.0.40
codegen_flags: <defaults>
</compile_context>

<pallas_src>
import functools
import math

import jax
import jax.numpy as jnp
from jax import lax
from jax.experimental import pallas as pl
from jax.experimental.pallas import tpu as pltpu

# Explicit scoped-VMEM budget: fits v7x's 64 MiB/TC and is below v5e/v6e physical.
_VMEM_LIMIT_BYTES = 64 * 1024 * 1024


# --------------------------------------------------------------------------- #
# Pass 1: fused, head-major Q/K/V projection
# --------------------------------------------------------------------------- #
def _qkv_proj_kernel(x_ref, wq_ref, wk_ref, wv_ref, q_ref, k_ref, v_ref, *,
                     num_heads):
    # x_ref : (block_t, d_in)             one time-tile of x (batch dim squeezed)
    # w*_ref: (H, d_in, head_dim)         per-head weight slabs (wq pre-scaled)
    # q/k/v : (H, block_t, head_dim)      head-major output tiles
    x_t = x_ref[...]

    def body(h, carry):
        q_ref[h] = jnp.dot(x_t, wq_ref[h],
                           preferred_element_type=jnp.float32).astype(q_ref.dtype)
        k_ref[h] = jnp.dot(x_t, wk_ref[h],
                           preferred_element_type=jnp.float32).astype(k_ref.dtype)
        v_ref[h] = jnp.dot(x_t, wv_ref[h],
                           preferred_element_type=jnp.float32).astype(v_ref.dtype)
        return carry

    lax.fori_loop(0, num_heads, body, 0)


# --------------------------------------------------------------------------- #
# Pass 2: flash attention over a compressed causal grid + fused out-projection
# --------------------------------------------------------------------------- #
def _flash_attn_kernel(qi_tab_ref, ki_tab_ref,
                       q_ref, k_ref, v_ref, wo_ref, bo_ref, o_ref,
                       m_scr, l_scr, acc_scr,
                       *, num_heads, head_dim, block_q, block_kv, approx_recip):
    # qi_tab_ref / ki_tab_ref : SMEM int32 tables mapping grid step -> (q_tile, kv_tile)
    # q_ref  : (H, block_q,  head_dim)    query tile (head-major, batch squeezed)
    # k_ref  : (H, block_kv, head_dim)    key tile
    # v_ref  : (H, block_kv, head_dim)    value tile
    # wo_ref : (H, head_dim, d_out)       out_proj weight, head-major
    # bo_ref : (1, d_out)                 out_proj bias
    # o_ref  : (block_q, d_out)
    # m_scr/l_scr : (H, block_q, 1) f32   running max / softmax denominator
    # acc_scr     : (H, block_q, head_dim) f32   unnormalized context accumulator
    step = pl.program_id(1)
    qi = qi_tab_ref[step]
    ki = ki_tab_ref[step]
    q_start = qi * block_q
    kv_start = ki * block_kv
    # Last kv tile that intersects the causal lower triangle for this q tile.
    last_ki = (q_start + block_q - 1) // block_kv
    d_out = num_heads * head_dim

    @pl.when(ki == 0)
    def _init():
        m_scr[...] = jnp.full_like(m_scr, -jnp.inf)
        l_scr[...] = jnp.zeros_like(l_scr)
        acc_scr[...] = jnp.zeros_like(acc_scr)

    def _attend(masked):
        if masked:
            # Mask built once per grid step (only diagonal tiles take this path).
            row_ids = q_start + lax.broadcasted_iota(jnp.int32, (block_q, block_kv), 0)
            col_ids = kv_start + lax.broadcasted_iota(jnp.int32, (block_q, block_kv), 1)
            keep = row_ids >= col_ids

        def body(h, carry):
            q_h = q_ref[h]                     # (block_q,  head_dim), compute dtype
            k_h = k_ref[h]                     # (block_kv, head_dim)
            v_h = v_ref[h]                     # (block_kv, head_dim)
            # scores: contract over head_dim without an explicit transpose (f32 acc)
            s = lax.dot_general(q_h, k_h, (((1,), (1,)), ((), ())),
                                preferred_element_type=jnp.float32)
            if masked:
                s = jnp.where(keep, s, -jnp.inf)
            m_prev = m_scr[h]                  # (block_q, 1) f32
            m_new = jnp.maximum(m_prev, jnp.max(s, axis=-1, keepdims=True))
            alpha = jnp.exp(m_prev - m_new)
            p = jnp.exp(s - m_new)             # unnormalized probs, f32
            l_scr[h] = alpha * l_scr[h] + jnp.sum(p, axis=-1, keepdims=True)
            acc_scr[h] = alpha * acc_scr[h] + jnp.dot(
                p.astype(v_h.dtype), v_h, preferred_element_type=jnp.float32)
            m_scr[h] = m_new
            return carry

        lax.fori_loop(0, num_heads, body, 0)

    # Only tiles straddling the diagonal need the causal mask.
    needs_mask = kv_start + block_kv - 1 > q_start

    @pl.when(needs_mask)
    def _diag_tile():
        _attend(True)

    @pl.when(jnp.logical_not(needs_mask))
    def _full_tile():
        _attend(False)

    @pl.when(ki == last_ki)
    def _finalize():
        # Deferred softmax normalization + fused out_proj:
        #   out = sum_h (acc[h] / l[h]) @ Wo[h] + bo     (lane-dense (block_q, d_out))
        def body(h, out_acc):
            inv_l = pl.reciprocal(l_scr[h], approx=approx_recip)   # (block_q, 1)
            ctx_h = acc_scr[h] * inv_l                             # f32
            return out_acc + jnp.dot(ctx_h.astype(wo_ref.dtype), wo_ref[h],
                                     preferred_element_type=jnp.float32)

        out_acc = lax.fori_loop(0, num_heads, body,
                                jnp.zeros((block_q, d_out), jnp.float32))
        o_ref[...] = (out_acc + bo_ref[...]).astype(o_ref.dtype)


# --------------------------------------------------------------------------- #
# Wrapper
# --------------------------------------------------------------------------- #
def multi_head_attention(x, wq, wk, wv, wo, bo, *, num_heads,
                         block_q=128, block_kv=128, block_t=256,
                         compute_dtype=jnp.bfloat16, approx_reciprocal=True):
    """x: (B, T, d_in); wq/wk/wv: (d_in, d_out) (pre-transposed, y = x @ W);
    wo: (d_out, d_out) pre-transposed; bo: (d_out,). Causal attention, eval mode
    (dropout identity). Returns (B, T, d_out) in x.dtype.

    block sizes: sweep block_kv up to 256-512 on v6e (128 MiB VMEM); keep 128-256
    on v7x (64 MiB VMEM, 2 cores). compute_dtype=bf16 feeds the MXU at bf16 peak
    while softmax stats / exp / accumulation stay f32."""
    B, T, d_in = x.shape
    d_out = wq.shape[1]
    assert d_out % num_heads == 0, "d_out must be divisible by num_heads"
    head_dim = d_out // num_heads

    block_q = min(block_q, T)
    block_kv = min(block_kv, T)
    block_t = min(block_t, T)
    assert T % block_q == 0 and T % block_kv == 0 and T % block_t == 0, \
        "T must be divisible by tile sizes"

    scale = 1.0 / math.sqrt(head_dim)
    # Head-major weight slabs: W_h[h] == W[:, h*hd:(h+1)*hd]; q-scale folded into Wq.
    wq_h = (wq * scale).reshape(d_in, num_heads, head_dim).transpose(1, 0, 2).astype(compute_dtype)
    wk_h = wk.reshape(d_in, num_heads, head_dim).transpose(1, 0, 2).astype(compute_dtype)
    wv_h = wv.reshape(d_in, num_heads, head_dim).transpose(1, 0, 2).astype(compute_dtype)
    wo_h = wo.reshape(num_heads, head_dim, d_out).astype(compute_dtype)
    bo2 = bo.reshape(1, d_out).astype(jnp.float32)
    x_c = x.astype(compute_dtype)

    # ---------------- Pass 1: Q/K/V projection (hoisted out of flash loop) -----
    proj_kernel = functools.partial(_qkv_proj_kernel, num_heads=num_heads)
    q, k, v = pl.pallas_call(
        proj_kernel,
        out_shape=(jax.ShapeDtypeStruct((B, num_heads, T, head_dim), compute_dtype),) * 3,
        grid_spec=pltpu.PrefetchScalarGridSpec(
            num_scalar_prefetch=0,
            grid=(B, T // block_t),
            in_specs=[
                pl.BlockSpec((None, block_t, d_in), lambda b, t: (b, t, 0)),
                pl.BlockSpec((num_heads, d_in, head_dim), lambda b, t: (0, 0, 0)),
                pl.BlockSpec((num_heads, d_in, head_dim), lambda b, t: (0, 0, 0)),
                pl.BlockSpec((num_heads, d_in, head_dim), lambda b, t: (0, 0, 0)),
            ],
            out_specs=[
                pl.BlockSpec((None, num_heads, block_t, head_dim), lambda b, t: (b, 0, t, 0)),
                pl.BlockSpec((None, num_heads, block_t, head_dim), lambda b, t: (b, 0, t, 0)),
                pl.BlockSpec((None, num_heads, block_t, head_dim), lambda b, t: (b, 0, t, 0)),
            ]),
        compiler_params=pltpu.CompilerParams(
            dimension_semantics=("parallel", "parallel"),
            vmem_limit_bytes=_VMEM_LIMIT_BYTES),
    )(x_c, wq_h, wk_h, wv_h)

    # ---------------- Pass 2: flash attention over compressed causal grid ------
    nq = T // block_q
    qi_list, ki_list = [], []
    for qi in range(nq):
        last = (qi * block_q + block_q - 1) // block_kv
        for ki in range(last + 1):
            qi_list.append(qi)
            ki_list.append(ki)
    qi_tab = jnp.asarray(qi_list, dtype=jnp.int32)
    ki_tab = jnp.asarray(ki_list, dtype=jnp.int32)
    n_steps = len(qi_list)          # ~nq*(nq+1)/2 instead of nq*nk

    flash_kernel = functools.partial(
        _flash_attn_kernel, num_heads=num_heads, head_dim=head_dim,
        block_q=block_q, block_kv=block_kv, approx_recip=approx_reciprocal)

    out = pl.pallas_call(
        flash_kernel,
        out_shape=jax.ShapeDtypeStruct((B, T, d_out), x.dtype),
        grid_spec=pltpu.PrefetchScalarGridSpec(
            num_scalar_prefetch=2,          # qi_tab, ki_tab live in SMEM
            grid=(B, n_steps),
            in_specs=[
                pl.BlockSpec((None, num_heads, block_q, head_dim),
                             lambda b, s, qt, kt: (b, 0, qt[s], 0)),
                pl.BlockSpec((None, num_heads, block_kv, head_dim),
                             lambda b, s, qt, kt: (b, 0, kt[s], 0)),
                pl.BlockSpec((None, num_heads, block_kv, head_dim),
                             lambda b, s, qt, kt: (b, 0, kt[s], 0)),
                pl.BlockSpec((num_heads, head_dim, d_out),
                             lambda b, s, qt, kt: (0, 0, 0)),
                pl.BlockSpec((1, d_out), lambda b, s, qt, kt: (0, 0)),
            ],
            out_specs=pl.BlockSpec((None, block_q, d_out),
                                   lambda b, s, qt, kt: (b, qt[s], 0)),
            scratch_shapes=[
                pltpu.VMEM((num_heads, block_q, 1), jnp.float32),         # running max
                pltpu.VMEM((num_heads, block_q, 1), jnp.float32),         # running denom
                pltpu.VMEM((num_heads, block_q, head_dim), jnp.float32),  # context acc
            ]),
        compiler_params=pltpu.CompilerParams(
            # batch axis shards across TensorCores; the compressed (q,kv) axis carries
            # the online-softmax accumulator and must stay sequential.
            dimension_semantics=("parallel", "arbitrary"),
            vmem_limit_bytes=_VMEM_LIMIT_BYTES),
    )(qi_tab, ki_tab, q, k, v, wo_h, bo2)

    return out


# --------------------------------------------------------------------------- #
# Pure-JAX reference (mirrors the PyTorch module)
# --------------------------------------------------------------------------- #
def _reference(x, wq, wk, wv, wo, bo, mask, *, num_heads):
    B, T, d_in = x.shape
    d_out = wq.shape[1]
    head_dim = d_out // num_heads
    q = (x @ wq).reshape(B, T, num_heads, head_dim).transpose(0, 2, 1, 3)
    k = (x @ wk).reshape(B, T, num_heads, head_dim).transpose(0, 2, 1, 3)
    v = (x @ wv).reshape(B, T, num_heads, head_dim).transpose(0, 2, 1, 3)
    scores = jnp.einsum('bhtd,bhsd->bhts', q, k)
    scores = jnp.where(mask[None, None] > 0.5, -jnp.inf, scores)
    w = jax.nn.softmax(scores / math.sqrt(head_dim), axis=-1)
    ctx = jnp.einsum('bhts,bhsd->bhtd', w, v).transpose(0, 2, 1, 3).reshape(B, T, d_out)
    return ctx @ wo + bo


if __name__ == "__main__":
    # Small shapes consistent with the module's forward.
    B, T, d_in, d_out, num_heads = 2, 8, 32, 32, 4
    context_length = T

    key = jax.random.PRNGKey(0)
    kx, kq, kk, kv_, ko, kb = jax.random.split(key, 6)

    x = jax.random.normal(kx, (B, T, d_in), dtype=jnp.float32)

    # nn.Linear-like uniform init, pre-transposed so y = x @ W (== PyTorch x @ W.T).
    def linear_w(k, fan_in, fan_out):
        bound = 1.0 / math.sqrt(fan_in)
        return jax.random.uniform(k, (fan_in, fan_out), jnp.float32, -bound, bound)

    wq = linear_w(kq, d_in, d_out)    # W_query (qkv_bias=False)
    wk = linear_w(kk, d_in, d_out)    # W_key
    wv = linear_w(kv_, d_in, d_out)   # W_value
    wo = linear_w(ko, d_out, d_out)   # out_proj weight
    bo = jax.random.uniform(kb, (d_out,), jnp.float32,
                            -1.0 / math.sqrt(d_out), 1.0 / math.sqrt(d_out))

    # 1) Strict correctness run: f32 operands, exact reciprocal.
    out_f32 = multi_head_attention(x, wq, wk, wv, wo, bo, num_heads=num_heads,
                                   compute_dtype=jnp.float32,
                                   approx_reciprocal=False)
    out_f32 = jax.block_until_ready(out_f32)

    # 2) Default performance configuration: bf16 MXU operands + approx reciprocal.
    out_perf = multi_head_attention(x, wq, wk, wv, wo, bo, num_heads=num_heads)
    out_perf = jax.block_until_ready(out_perf)

    # Reference uses the explicit triu mask buffer like the PyTorch module.
    mask = jnp.triu(jnp.ones((context_length, context_length), jnp.float32), k=1)
    ref = _reference(x, wq, wk, wv, wo, bo, mask, num_heads=num_heads)

    assert out_f32.shape == (B, T, d_out)
    assert jnp.allclose(out_f32, ref, atol=1e-4, rtol=1e-4), \
        f"f32 max err {jnp.max(jnp.abs(out_f32 - ref))}"
    assert jnp.allclose(out_perf, ref, atol=5e-2, rtol=5e-2), \
        f"bf16 max err {jnp.max(jnp.abs(out_perf - ref))}"

    print("KERNEL_OK")
</pallas_src>

<mosaic_0001>
module attributes {stable_mosaic.version = 11 : i64} {
  func.func @_qkv_proj_kernel(%arg0: i32, %arg1: i32, %arg2: memref<1x8x32xf32, #tpu.memory_space<vmem>>, %arg3: memref<4x32x8xf32, #tpu.memory_space<vmem>>, %arg4: memref<4x32x8xf32, #tpu.memory_space<vmem>>, %arg5: memref<4x32x8xf32, #tpu.memory_space<vmem>>, %arg6: memref<1x4x8x8xf32, #tpu.memory_space<vmem>>, %arg7: memref<1x4x8x8xf32, #tpu.memory_space<vmem>>, %arg8: memref<1x4x8x8xf32, #tpu.memory_space<vmem>>) attributes {dimension_semantics = [#tpu.dimension_semantics<parallel>, #tpu.dimension_semantics<parallel>], iteration_bounds = array<i64: 2, 1>, scalar_prefetch = 0 : i64, scratch_operands = 0 : i64, tpu.core_type = #tpu.core_type<tc>, window_params = [{transform_indices = @transform_0, window_bounds = array<i64: 1, 8, 32>}, {pipeline_mode = #tpu.pipeline_mode<synchronous>, transform_indices = @transform_1, window_bounds = array<i64: 4, 32, 8>}, {pipeline_mode = #tpu.pipeline_mode<synchronous>, transform_indices = @transform_2, window_bounds = array<i64: 4, 32, 8>}, {pipeline_mode = #tpu.pipeline_mode<synchronous>, transform_indices = @transform_3, window_bounds = array<i64: 4, 32, 8>}, {transform_indices = @transform_4, window_bounds = array<i64: 1, 4, 8, 8>}, {transform_indices = @transform_5, window_bounds = array<i64: 1, 4, 8, 8>}, {transform_indices = @transform_6, window_bounds = array<i64: 1, 4, 8, 8>}]} {
    %c0 = arith.constant 0 : index
    %c0_0 = arith.constant 0 : index
    %c0_1 = arith.constant 0 : index
    %0 = vector.load %arg2[%c0, %c0_0, %c0_1] : memref<1x8x32xf32, #tpu.memory_space<vmem>>, vector<1x8x32xf32>
    %1 = vector.shape_cast %0 : vector<1x8x32xf32> to vector<8x32xf32>
    %c0_i32 = arith.constant 0 : i32
    %c4_i32 = arith.constant 4 : i32
    %2 = arith.addi %c0_i32, %c4_i32 : i32
    %c1_i32 = arith.constant 1 : i32
    scf.for %arg9 = %c0_i32 to %2 step %c1_i32  : i32 {
      %3 = arith.index_cast %arg9 : i32 to index
      %c0_3 = arith.constant 0 : index
      %c0_4 = arith.constant 0 : index
      %4 = vector.load %arg3[%3, %c0_3, %c0_4] : memref<4x32x8xf32, #tpu.memory_space<vmem>>, vector<1x32x8xf32>
      %5 = vector.shape_cast %4 : vector<1x32x8xf32> to vector<32x8xf32>
      %cst = arith.constant dense<0.000000e+00> : vector<8x8xf32>
      %6 = tpu.matmul %1, %5, %cst {dimension_numbers = #tpu.dot_dimension_numbers<[1], [0], [0], [1], [0, 0, 1, 1], [], []>} : vector<8x32xf32>, vector<32x8xf32>, vector<8x8xf32> -> vector<8x8xf32>
      %c0_5 = arith.constant 0 : index
      %7 = arith.index_cast %arg9 : i32 to index
      %c0_6 = arith.constant 0 : index
      %c0_7 = arith.constant 0 : index
      %8 = vector.load %arg6[%c0_5, %7, %c0_6, %c0_7] : memref<1x4x8x8xf32, #tpu.memory_space<vmem>>, vector<1x1x8x8xf32>
      %9 = vector.shape_cast %8 : vector<1x1x8x8xf32> to vector<8x8xf32>
      %10 = vector.shape_cast %6 : vector<8x8xf32> to vector<1x1x8x8xf32>
      tpu.vector_store %arg6[%c0_5, %7, %c0_6, %c0_7], %10 {strides = array<i32>} : memref<1x4x8x8xf32, #tpu.memory_space<vmem>>, vector<1x1x8x8xf32>,
      %11 = arith.index_cast %arg9 : i32 to index
      %c0_8 = arith.constant 0 : index
      %c0_9 = arith.constant 0 : index
      %12 = vector.load %arg4[%11, %c0_8, %c0_9] : memref<4x32x8xf32, #tpu.memory_space<vmem>>, vector<1x32x8xf32>
      %13 = vector.shape_cast %12 : vector<1x32x8xf32> to vector<32x8xf32>
      %cst_10 = arith.constant dense<0.000000e+00> : vector<8x8xf32>
      %14 = tpu.matmul %1, %13, %cst_10 {dimension_numbers = #tpu.dot_dimension_numbers<[1], [0], [0], [1], [0, 0, 1, 1], [], []>} : vector<8x32xf32>, vector<32x8xf32>, vector<8x8xf32> -> vector<8x8xf32>
      %c0_11 = arith.constant 0 : index
      %15 = arith.index_cast %arg9 : i32 to index
      %c0_12 = arith.constant 0 : index
      %c0_13 = arith.constant 0 : index
      %16 = vector.load %arg7[%c0_11, %15, %c0_12, %c0_13] : memref<1x4x8x8xf32, #tpu.memory_space<vmem>>, vector<1x1x8x8xf32>
      %17 = vector.shape_cast %16 : vector<1x1x8x8xf32> to vector<8x8xf32>
      %18 = vector.shape_cast %14 : vector<8x8xf32> to vector<1x1x8x8xf32>
      tpu.vector_store %arg7[%c0_11, %15, %c0_12, %c0_13], %18 {strides = array<i32>} : memref<1x4x8x8xf32, #tpu.memory_space<vmem>>, vector<1x1x8x8xf32>,
      %19 = arith.index_cast %arg9 : i32 to index
      %c0_14 = arith.constant 0 : index
      %c0_15 = arith.constant 0 : index
      %20 = vector.load %arg5[%19, %c0_14, %c0_15] : memref<4x32x8xf32, #tpu.memory_space<vmem>>, vector<1x32x8xf32>
      %21 = vector.shape_cast %20 : vector<1x32x8xf32> to vector<32x8xf32>
      %cst_16 = arith.constant dense<0.000000e+00> : vector<8x8xf32>
      %22 = tpu.matmul %1, %21, %cst_16 {dimension_numbers = #tpu.dot_dimension_numbers<[1], [0], [0], [1], [0, 0, 1, 1], [], []>} : vector<8x32xf32>, vector<32x8xf32>, vector<8x8xf32> -> vector<8x8xf32>
      %c0_17 = arith.constant 0 : index
      %23 = arith.index_cast %arg9 : i32 to index
      %c0_18 = arith.constant 0 : index
      %c0_19 = arith.constant 0 : index
      %24 = vector.load %arg8[%c0_17, %23, %c0_18, %c0_19] : memref<1x4x8x8xf32, #tpu.memory_space<vmem>>, vector<1x1x8x8xf32>
      %25 = vector.shape_cast %24 : vector<1x1x8x8xf32> to vector<8x8xf32>
      %26 = vector.shape_cast %22 : vector<8x8xf32> to vector<1x1x8x8xf32>
      tpu.vector_store %arg8[%c0_17, %23, %c0_18, %c0_19], %26 {strides = array<i32>} : memref<1x4x8x8xf32, #tpu.memory_space<vmem>>, vector<1x1x8x8xf32>,
    }
    %c4_i32_2 = arith.constant 4 : i32
    return
  }
  func.func @transform_0(%arg0: i32, %arg1: i32) -> (i32, i32, i32) {
    %c0_i32 = arith.constant 0 : i32
    %c0_i32_0 = arith.constant 0 : i32
    return %arg0, %arg1, %c0_i32 : i32, i32, i32
  }
  func.func @transform_1(%arg0: i32, %arg1: i32) -> (i32, i32, i32) {
    %c0_i32 = arith.constant 0 : i32
    %c0_i32_0 = arith.constant 0 : i32
    %c0_i32_1 = arith.constant 0 : i32
    %c0_i32_2 = arith.constant 0 : i32
    return %c0_i32, %c0_i32_0, %c0_i32_1 : i32, i32, i32
  }
  func.func @transform_2(%arg0: i32, %arg1: i32) -> (i32, i32, i32) {
    %c0_i32 = arith.constant 0 : i32
    %c0_i32_0 = arith.constant 0 : i32
    %c0_i32_1 = arith.constant 0 : i32
    %c0_i32_2 = arith.constant 0 : i32
    return %c0_i32, %c0_i32_0, %c0_i32_1 : i32, i32, i32
  }
  func.func @transform_3(%arg0: i32, %arg1: i32) -> (i32, i32, i32) {
    %c0_i32 = arith.constant 0 : i32
    %c0_i32_0 = arith.constant 0 : i32
    %c0_i32_1 = arith.constant 0 : i32
    %c0_i32_2 = arith.constant 0 : i32
    return %c0_i32, %c0_i32_0, %c0_i32_1 : i32, i32, i32
  }
  func.func @transform_4(%arg0: i32, %arg1: i32) -> (i32, i32, i32, i32) {
    %c0_i32 = arith.constant 0 : i32
    %c0_i32_0 = arith.constant 0 : i32
    %c0_i32_1 = arith.constant 0 : i32
    return %arg0, %c0_i32, %arg1, %c0_i32_0 : i32, i32, i32, i32
  }
  func.func @transform_5(%arg0: i32, %arg1: i32) -> (i32, i32, i32, i32) {
    %c0_i32 = arith.constant 0 : i32
    %c0_i32_0 = arith.constant 0 : i32
    %c0_i32_1 = arith.constant 0 : i32
    return %arg0, %c0_i32, %arg1, %c0_i32_0 : i32, i32, i32, i32
  }
  func.func @transform_6(%arg0: i32, %arg1: i32) -> (i32, i32, i32, i32) {
    %c0_i32 = arith.constant 0 : i32
    %c0_i32_0 = arith.constant 0 : i32
    %c0_i32_1 = arith.constant 0 : i32
    return %arg0, %c0_i32, %arg1, %c0_i32_0 : i32, i32, i32, i32
  }
}

</mosaic_0001>

<llo_original>
// kernel: tpu_custom_call.1
$region0: #{tpu_custom_call.1}
  #allocation0 [shape = 'u32[]', space=smem, size = 0x4, offset = 0x4, fixed_abs, tag = 'smem constant byte address 0x4 - core index']
  #allocation1 [shape = 'u32[144,128]{1,0:T(1,128)}', space=vmem, size = 0x12000, scoped, tag = 'internal scratch']
  %s0 = inlined_call_operand.hbm [shape: f32[2,8,32], index: 0, kind: input, shape index: {}]
  %s1 = inlined_call_operand.hbm [shape: f32[4,32,8], index: 1, kind: input, shape index: {}]
  %s2 = inlined_call_operand.hbm [shape: f32[4,32,8], index: 2, kind: input, shape index: {}]
  %s3 = inlined_call_operand.hbm [shape: f32[4,32,8], index: 3, kind: input, shape index: {}]
  %s4 = inlined_call_operand.hbm [shape: f32[2,4,8,8], index: 4, kind: output, shape index: {0}]
  %s5 = inlined_call_operand.hbm [shape: f32[2,4,8,8], index: 5, kind: output, shape index: {1}]
  %s6 = inlined_call_operand.hbm [shape: f32[2,4,8,8], index: 6, kind: output, shape index: {2}]
  %7 = xla_tuple %s4, %s5, %s6
  %s8 = sld [smem:[#allocation0]]
  $region88: #{tpu_custom_call.1} parent=0
    _
  %s10 = ssub.s32 1, %s8
  %s11 = scalar_select 0, %s10, %s8
  $region1: #{tpu_custom_call.1} parent=0
    #allocation2 [shape = 'u8[8192]{0}', space=vmem, size = 0x2000, scoped, tag = 'input window, operand 0']
    #allocation3 [shape = 's32[2]{0}', space=sflag, size = 0x8, scoped, tag = 'scoped memory for tpu_custom_call.1']
    #allocation4 [shape = 's32[2]{0}', space=sflag, size = 0x8, scoped, tag = 'scoped memory for tpu_custom_call.1']
    #allocation5 [shape = 'u8[65536]{0}', space=vmem, size = 0x10000, scoped, tag = 'input window, operand 1, single buffered']
    #allocation6 [shape = 's32[1]{0}', space=sflag, size = 0x4, scoped, tag = 'scoped memory for tpu_custom_call.1']
    #allocation7 [shape = 'u8[65536]{0}', space=vmem, size = 0x10000, scoped, tag = 'input window, operand 2, single buffered']
    #allocation8 [shape = 'u8[65536]{0}', space=vmem, size = 0x10000, scoped, tag = 'input window, operand 3, single buffered']
    #allocation9 [shape = 's32[1]{0}', space=sflag, size = 0x4, scoped, tag = 'scoped memory for tpu_custom_call.1']
    #allocation10 [shape = 'u8[32768]{0}', space=vmem, size = 0x8000, scoped, tag = 'output window, operand 0']
    #allocation11 [shape = 'u8[32768]{0}', space=vmem, size = 0x8000, scoped, tag = 'output window, operand 1']
    #allocation12 [shape = 's32[2]{0}', space=sflag, size = 0x8, scoped, tag = 'scoped memory for tpu_custom_call.1']
    #allocation13 [shape = 'u8[32768]{0}', space=vmem, size = 0x8000, scoped, tag = 'output window, operand 2']
    %12 = vsyncpa [#allocation3], 0
    %s13 = scalar_lea.sflag [#allocation3], 1
    %14 = vsyncpa %s13, 0
    %15 = vsyncpa [#allocation6], 0
    %16 = vsyncpa [#allocation9], 0
    %17 = vsyncpa [#allocation4], 0
    %s18 = scalar_lea.sflag [#allocation4], 1
    %19 = vsyncpa %s18, 0
    %20 = vsyncpa [#allocation12], 0
    %s21 = scalar_lea.sflag [#allocation12], 1
    %22 = vsyncpa %s21, 0
    loop: start=0, step=1, limit=4
    $region2: #{tpu_custom_call.1} parent=1 // loop_pre_header
      _
    $region3: #{tpu_custom_call.1} parent=1 // loop_header
      %s24 = sphi 0, %s28
      %p25 = scmp.ge.s32.totalorder %s24, 4
      %s31 = sphi 0, %s43
      %s32 = sphi 0, %s39
      %s33 = sphi 0, %s31
      %s34 = sphi 0, %s32
      %s35 = sphi 0, %s33
      %s36 = sphi 0, %s34
      %s48 = sphi 0, %s50
      %s51 = sphi 0, %s48
      %s52 = sphi 0, %s51
      %s68 = sphi 0, %s52
      %s72 = sphi 0, %s72
      %s74 = sphi 0, %s72
      %s75 = sphi 0, %s74
      %s89 = sphi 0, %s75
      %s93 = sphi 0, %s93
      %s95 = sphi 0, %s93
      %s96 = sphi 0, %s95
      %s110 = sphi 0, %s96
      %s114 = sphi 0, %s114
      %s116 = sphi 0, %s114
      %s117 = sphi 0, %s116
      %s131 = sphi 0, %s117
      %s139 = sphi 0, %s141
      %s142 = sphi 0, %s139
      %s143 = sphi 0, %s142
      %s159 = sphi 0, %s143
      %s167 = sphi 0, %s169
      %s170 = sphi 0, %s167
      %s171 = sphi 0, %s170
      %s187 = sphi 0, %s171
      %s195 = sphi 0, %s197
      %s198 = sphi 0, %s195
      %s199 = sphi 0, %s198
      %s215 = sphi 0, %s199
    $region4: #{tpu_custom_call.1} parent=1 // loop_header_branch
      %27 = sbr.rel (%p25) target = $region8
    $region5: #{tpu_custom_call.1} parent=1 // loop_body
      %s29 = ssub.s32 %s24, 1
      %s30 = ssub.s32 %s24, 2
      %s37 = sadd.s32 1, %s32
      %p38 = scmp.ge.s32.totalorder %s37, 1
      %s39 = scalar_select %p38, 0, %s37
      %s40 = sadd.s32 1, %s31
      %s41 = scalar_select %p38, %s40, %s31
      %p42 = scmp.ge.s32.totalorder %s41, 2
      %s43 = scalar_select %p42, 0, %s41
      %s44 = ssub.s32 %s31, %s43
      %s45 = ssub.s32 %s32, %s39
      %s46 = sor.u32 %s44, %s45
      %p47 = scmp.eq.s32.totalorder %s46, 0
      %s49 = sadd.s32 %s48, 1
      %s50 = scalar_select %p47, %s48, %s49
      %p53 = pneg %p47
      %p54 = scmp.eq.s32.totalorder %s24, 1
      %p55 = por %p53, %p54
      %p56 = scmp.ne.s32.totalorder %s48, %s51
      %p57 = scmp.eq.s32.totalorder %s24, 0
      %p58 = por %p56, %p57
      %p59 = scmp.ne.s32.totalorder %s48, %s51
      %p60 = scmp.eq.s32.totalorder %s29, 1
      %p61 = por %p59, %p60
      %p62 = scmp.ne.s32.totalorder %s51, %s52
      %p63 = scmp.eq.s32.totalorder %s29, 0
      %p64 = por %p62, %p63
      %p65 = scmp.ne.s32.totalorder %s51, %s52
      %p66 = scmp.eq.s32.totalorder %s30, 1
      %p67 = por %p65, %p66
      %p69 = scmp.ne.s32.totalorder %s52, %s68
      %p70 = scmp.eq.s32.totalorder %s30, 0
      %p71 = por %p69, %p70
      %s73 = sadd.s32 %s72, 1
      %p76 = scmp.eq.s32.totalorder %s24, 1
      %p77 = scmp.ne.s32.totalorder %s72, %s74
      %p78 = scmp.eq.s32.totalorder %s24, 0
      %p79 = por %p77, %p78
      %p80 = scmp.ne.s32.totalorder %s72, %s74
      %p81 = scmp.eq.s32.totalorder %s29, 1
      %p82 = por %p80, %p81
      %p83 = scmp.ne.s32.totalorder %s74, %s75
      %p84 = scmp.eq.s32.totalorder %s29, 0
      %p85 = por %p83, %p84
      %p86 = scmp.ne.s32.totalorder %s74, %s75
      %p87 = scmp.eq.s32.totalorder %s30, 1
      %p88 = por %p86, %p87
      %p90 = scmp.ne.s32.totalorder %s75, %s89
      %p91 = scmp.eq.s32.totalorder %s30, 0
      %p92 = por %p90, %p91
      %s94 = sadd.s32 %s93, 1
      %p97 = scmp.eq.s32.totalorder %s24, 1
      %p98 = scmp.ne.s32.totalorder %s93, %s95
      %p99 = scmp.eq.s32.totalorder %s24, 0
      %p100 = por %p98, %p99
      %p101 = scmp.ne.s32.totalorder %s93, %s95
      %p102 = scmp.eq.s32.totalorder %s29, 1
      %p103 = por %p101, %p102
      %p104 = scmp.ne.s32.totalorder %s95, %s96
      %p105 = scmp.eq.s32.totalorder %s29, 0
      %p106 = por %p104, %p105
      %p107 = scmp.ne.s32.totalorder %s95, %s96
      %p108 = scmp.eq.s32.totalorder %s30, 1
      %p109 = por %p107, %p108
      %p111 = scmp.ne.s32.totalorder %s96, %s110
      %p112 = scmp.eq.s32.totalorder %s30, 0
      %p113 = por %p111, %p112
      %s115 = sadd.s32 %s114, 1
      %p118 = scmp.eq.s32.totalorder %s24, 1
      %p119 = scmp.ne.s32.totalorder %s114, %s116
      %p120 = scmp.eq.s32.totalorder %s24, 0
      %p121 = por %p119, %p120
      %p122 = scmp.ne.s32.totalorder %s114, %s116
      %p123 = scmp.eq.s32.totalorder %s29, 1
      %p124 = por %p122, %p123
      %p125 = scmp.ne.s32.totalorder %s116, %s117
      %p126 = scmp.eq.s32.totalorder %s29, 0
      %p127 = por %p125, %p126
      %p128 = scmp.ne.s32.totalorder %s116, %s117
      %p129 = scmp.eq.s32.totalorder %s30, 1
      %p130 = por %p128, %p129
      %p132 = scmp.ne.s32.totalorder %s117, %s131
      %p133 = scmp.eq.s32.totalorder %s30, 0
      %p134 = por %p132, %p133
      %s135 = ssub.s32 %s31, %s43
      %s136 = ssub.s32 %s32, %s39
      %s137 = sor.u32 %s135, %s136
      %p138 = scmp.eq.s32.totalorder %s137, 0
      %s140 = sadd.s32 %s139, 1
      %s141 = scalar_select %p138, %s139, %s140
      %p144 = pneg %p138
      %p145 = scmp.eq.s32.totalorder %s24, 1
      %p146 = por %p144, %p145
      %p147 = scmp.ne.s32.totalorder %s139, %s142
      %p148 = scmp.eq.s32.totalorder %s24, 0
      %p149 = por %p147, %p148
      %p150 = scmp.ne.s32.totalorder %s139, %s142
      %p151 = scmp.eq.s32.totalorder %s29, 1
      %p152 = por %p150, %p151
      %p153 = scmp.ne.s32.totalorder %s142, %s143
      %p154 = scmp.eq.s32.totalorder %s29, 0
      %p155 = por %p153, %p154
      %p156 = scmp.ne.s32.totalorder %s142, %s143
      %p157 = scmp.eq.s32.totalorder %s30, 1
      %p158 = por %p156, %p157
      %p160 = scmp.ne.s32.totalorder %s143, %s159
      %p161 = scmp.eq.s32.totalorder %s30, 0
      %p162 = por %p160, %p161
      %s163 = ssub.s32 %s31, %s43
      %s164 = ssub.s32 %s32, %s39
      %s165 = sor.u32 %s163, %s164
      %p166 = scmp.eq.s32.totalorder %s165, 0
      %s168 = sadd.s32 %s167, 1
      %s169 = scalar_select %p166, %s167, %s168
      %p172 = pneg %p166
      %p173 = scmp.eq.s32.totalorder %s24, 1
      %p174 = por %p172, %p173
      %p175 = scmp.ne.s32.totalorder %s167, %s170
      %p176 = scmp.eq.s32.totalorder %s24, 0
      %p177 = por %p175, %p176
      %p178 = scmp.ne.s32.totalorder %s167, %s170
      %p179 = scmp.eq.s32.totalorder %s29, 1
      %p180 = por %p178, %p179
      %p181 = scmp.ne.s32.totalorder %s170, %s171
      %p182 = scmp.eq.s32.totalorder %s29, 0
      %p183 = por %p181, %p182
      %p184 = scmp.ne.s32.totalorder %s170, %s171
      %p185 = scmp.eq.s32.totalorder %s30, 1
      %p186 = por %p184, %p185
      %p188 = scmp.ne.s32.totalorder %s171, %s187
      %p189 = scmp.eq.s32.totalorder %s30, 0
      %p190 = por %p188, %p189
      %s191 = ssub.s32 %s31, %s43
      %s192 = ssub.s32 %s32, %s39
      %s193 = sor.u32 %s191, %s192
      %p194 = scmp.eq.s32.totalorder %s193, 0
      %s196 = sadd.s32 %s195, 1
      %s197 = scalar_select %p194, %s195, %s196
      %p200 = pneg %p194
      %p201 = scmp.eq.s32.totalorder %s24, 1
      %p202 = por %p200, %p201
      %p203 = scmp.ne.s32.totalorder %s195, %s198
      %p204 = scmp.eq.s32.totalorder %s24, 0
      %p205 = por %p203, %p204
      %p206 = scmp.ne.s32.totalorder %s195, %s198
      %p207 = scmp.eq.s32.totalorder %s29, 1
      %p208 = por %p206, %p207
      %p209 = scmp.ne.s32.totalorder %s198, %s199
      %p210 = scmp.eq.s32.totalorder %s29, 0
      %p211 = por %p209, %p210
      %p212 = scmp.ne.s32.totalorder %s198, %s199
      %p213 = scmp.eq.s32.totalorder %s30, 1
      %p214 = por %p212, %p213
      %p216 = scmp.ne.s32.totalorder %s199, %s215
      %p217 = scmp.eq.s32.totalorder %s30, 0
      %p218 = por %p216, %p217
      %p219 = scmp.le.s32.totalorder 1, %s24
      %p220 = scmp.lt.s32.totalorder %s24, 3
      %p221 = pnand %p219, %p220
      %p222 = pneg %p221
      // Predicated region
      $region9: #{tpu_custom_call.1} parent=5 // pred_check
        _
      $region10: #{tpu_custom_call.1} parent=5 // pred_check_branch
        %224 = sbr.rel (%p221) target = $region12
      $region11: #{tpu_custom_call.1} parent=5 // pred_region
        %s225 = ssub.s32 %s24, 1
        // Predicated region
        $region13: #{tpu_custom_call.1} parent=11 // pred_check
          %p226 = pneg %p85
        $region14: #{tpu_custom_call.1} parent=11 // pred_check_branch
          %228 = sbr.rel (%p226) target = $region16
        $region15: #{tpu_custom_call.1} parent=11 // pred_region
          %s230 = ssub.s32 2048, 2048
          %231 = vsyncadd [#allocation6], %s230
          %s232 = sshll.u32 [#allocation5], 4
          %s233 = int_to_ptr.vmem [resolvable:$true] %s232
          %238 = dma.hbm_to_vmem [thread:$0]  %s1, 2048, %s233, [#allocation6], 128, 128, 8
        $region16: #{tpu_custom_call.1} parent=11 // pred_fallthru
          _
        // Predicated region
        $region17: #{tpu_custom_call.1} parent=11 // pred_check
          %p239 = pneg %p106
        $region18: #{tpu_custom_call.1} parent=11 // pred_check_branch
          %241 = sbr.rel (%p239) target = $region20
        $region19: #{tpu_custom_call.1} parent=11 // pred_region
          %s243 = ssub.s32 2048, 2048
          %244 = vsyncadd [#allocation6], %s243
          %s245 = sshll.u32 [#allocation7], 4
          %s246 = int_to_ptr.vmem [resolvable:$true] %s245
          %251 = dma.hbm_to_vmem [thread:$0]  %s2, 2048, %s246, [#allocation6], 128, 128, 8
        $region20: #{tpu_custom_call.1} parent=11 // pred_fallthru
          _
        // Predicated region
        $region21: #{tpu_custom_call.1} parent=11 // pred_check
          %p252 = pneg %p127
        $region22: #{tpu_custom_call.1} parent=11 // pred_check_branch
          %254 = sbr.rel (%p252) target = $region24
        $region23: #{tpu_custom_call.1} parent=11 // pred_region
          %s256 = ssub.s32 2048, 2048
          %257 = vsyncadd [#allocation9], %s256
          %s258 = sshll.u32 [#allocation8], 4
          %s259 = int_to_ptr.vmem [resolvable:$true] %s258
          %264 = dma.hbm_to_vmem [thread:$0]  %s3, 2048, %s259, [#allocation9], 128, 128, 8
        $region24: #{tpu_custom_call.1} parent=11 // pred_fallthru
          _
      $region12: #{tpu_custom_call.1} parent=5 // pred_fallthru
        _
      %p265 = scmp.lt.s32.totalorder %s24, 2
      // Predicated region
      $region25: #{tpu_custom_call.1} parent=5 // pred_check
        %p266 = pneg %p265
      $region26: #{tpu_custom_call.1} parent=5 // pred_check_branch
        %268 = sbr.rel (%p266) target = $region28
      $region27: #{tpu_custom_call.1} parent=5 // pred_region
        // Predicated region
        $region29: #{tpu_custom_call.1} parent=27 // pred_check
          %p269 = pneg %p58
        $region30: #{tpu_custom_call.1} parent=27 // pred_check_branch
          %271 = sbr.rel (%p269) target = $region32
        $region31: #{tpu_custom_call.1} parent=27 // pred_region
          %s272 = sand.u32 %s48, 1
          %s273 = scalar_lea.sflag [#allocation3], %s272
          %s274 = sand.u32 %s48, 1
          %s275 = smul.addr %s274, 8
          %s276 = scalar_lea.vmem [#allocation2], %s275
          %s278 = ssub.s32 128, 128
          %279 = vsyncadd %s273, %s278
          %s280 = sadd.s32 %s32, %s31
          %s281 = smul.addr %s280, 128
          %s282 = scalar_lea.hbm %s0, %s281
          %s284 = sshll.u32 %s276, 4
          %s285 = int_to_ptr.vmem [resolvable:$true] %s284
          %287 = dma.hbm_to_vmem [thread:$0]  %s282, 128, %s285, %s273
        $region32: #{tpu_custom_call.1} parent=27 // pred_fallthru
          _
      $region28: #{tpu_custom_call.1} parent=5 // pred_fallthru
        _
      %p288 = scmp.le.s32.totalorder 1, %s24
      %p289 = scmp.lt.s32.totalorder %s24, 3
      %p290 = pnand %p288, %p289
      %p291 = pneg %p290
      // Predicated region
      $region33: #{tpu_custom_call.1} parent=5 // pred_check
        _
      $region34: #{tpu_custom_call.1} parent=5 // pred_check_branch
        %293 = sbr.rel (%p290) target = $region36
      $region35: #{tpu_custom_call.1} parent=5 // pred_region
        %s294 = ssub.s32 %s24, 1
        %s295 = sand.u32 %s51, 1
        %s296 = scalar_lea.sflag [#allocation3], %s295
        %s297 = sand.u32 %s51, 1
        %s298 = smul.addr %s297, 8
        %s299 = scalar_lea.vmem [#allocation2], %s298
        // Predicated region
        $region37: #{tpu_custom_call.1} parent=35 // pred_check
          %p300 = pneg %p64
        $region38: #{tpu_custom_call.1} parent=35 // pred_check_branch
          %302 = sbr.rel (%p300) target = $region40
        $region39: #{tpu_custom_call.1} parent=35 // pred_region
          %303 = dma.done %s296, 128
        $region40: #{tpu_custom_call.1} parent=35 // pred_fallthru
          _
        // Predicated region
        $region41: #{tpu_custom_call.1} parent=35 // pred_check
          %p304 = pneg %p85
        $region42: #{tpu_custom_call.1} parent=35 // pred_check_branch
          %306 = sbr.rel (%p304) target = $region44
        $region43: #{tpu_custom_call.1} parent=35 // pred_region
          %307 = dma.done [#allocation6], 2048
        $region44: #{tpu_custom_call.1} parent=35 // pred_fallthru
          _
        // Predicated region
        $region45: #{tpu_custom_call.1} parent=35 // pred_check
          %p308 = pneg %p106
        $region46: #{tpu_custom_call.1} parent=35 // pred_check_branch
          %310 = sbr.rel (%p308) target = $region48
        $region47: #{tpu_custom_call.1} parent=35 // pred_region
          %311 = dma.done [#allocation6], 2048
        $region48: #{tpu_custom_call.1} parent=35 // pred_fallthru
          _
        // Predicated region
        $region49: #{tpu_custom_call.1} parent=35 // pred_check
          %p312 = pneg %p127
        $region50: #{tpu_custom_call.1} parent=35 // pred_check_branch
          %314 = sbr.rel (%p312) target = $region52
        $region51: #{tpu_custom_call.1} parent=35 // pred_region
          %315 = dma.done [#allocation9], 2048
        $region52: #{tpu_custom_call.1} parent=35 // pred_fallthru
          _
        %s316 = sand.u32 %s51, 1
        %s317 = scalar_lea.sflag [#allocation3], %s316
        %s318 = sand.u32 %s51, 1
        %s319 = smul.addr %s318, 8
        %s320 = scalar_lea.vmem [#allocation2], %s319
        %p321 = pneg %p64
        %p322 = pneg %p61
        %p323 = pneg %p85
        %p324 = pneg %p82
        %p325 = pneg %p106
        %p326 = pneg %p103
        %p327 = pneg %p127
        %p328 = pneg %p124
        %p329 = pneg %p155
        %p330 = pneg %p152
        %s331 = sand.u32 %s142, 1
        %s332 = scalar_lea.sflag [#allocation4], %s331
        %s333 = sand.u32 %s142, 1
        %s334 = smul.addr %s333, 32
        %s335 = scalar_lea.vmem [#allocation10], %s334
        %p336 = pneg %p183
        %p337 = pneg %p180
        %s338 = sand.u32 %s29, 1
        %s339 = scalar_lea.sflag [#allocation12], %s338
        %s340 = sand.u32 %s170, 1
        %s341 = smul.addr %s340, 32
        %s342 = scalar_lea.vmem [#allocation11], %s341
        %p343 = pneg %p211
        %p344 = pneg %p208
        %s345 = sand.u32 %s29, 1
        %s346 = scalar_lea.sflag [#allocation12], %s345
        %s347 = sand.u32 %s198, 1
        %s348 = smul.addr %s347, 32
        %s349 = scalar_lea.vmem [#allocation13], %s348
        %v350 = vld [vmem:[%s299] sm:$0xff]
        loop: start=0, step=1, limit=4
        $region53: #{tpu_custom_call.1} parent=35 // loop_pre_header
          _
        $region54: #{tpu_custom_call.1} parent=35 // loop_header
          %s352 = sphi 0, %s356
          %p353 = scmp.ge.s32.totalorder %s352, 4
        $region55: #{tpu_custom_call.1} parent=35 // loop_header_branch
          %355 = sbr.rel (%p353) target = $region59
        $region56: #{tpu_custom_call.1} parent=35 // loop_body
          %s357 = smul.u32 %s352, 32
          %s358 = scalar_lea.vmem [#allocation5], %s357
          %v359 = vld [vmem:[%s358] sm:$0xff]
          %v360 = vld [vmem:[%s358 + $0x8] sm:$0xff]
          %v361 = vld [vmem:[%s358 + $0x10] sm:$0xff]
          %v362 = vld [vmem:[%s358 + $0x18] sm:$0xff]
          %vm363 = vcmask 261120
          %v365 = vsel %vm363, %v350, 0
          %367 = vmatprep.subr.mxu0 0.0
          %368 = vmatpush1.msra.mxu0 %v359
          %369 = vmatprep.subr.mxu0 0.0
          %370 = vmatpush1.msra.mxu0 %v360
          %371 = vmatprep.subr.mxu0 0.0
          %372 = vmatpush1.msra.mxu0 %v361
          %373 = vmatprep.subr.mxu0 0.0
          %374 = vmatpush1.msra.mxu0 %v362
          %375 = vmatprep.subr.mxu0 0.0
          %376 = vmatpush1.msra.mxu0 0.0
          %377 = vmatprep.subr.mxu0 0.0
          %378 = vmatpush1.msra.mxu0 0.0
          %379 = vmatprep.subr.mxu0 0.0
          %380 = vmatpush1.msra.mxu0 0.0
          %381 = vmatprep.subr.mxu0 0.0
          %382 = vmatpush1.msra.mxu0 0.0
          %383 = vmatprep.subr.mxu0 0.0
          %384 = vmatpush1.msra.mxu0 0.0
          %385 = vmatprep.subr.mxu0 0.0
          %386 = vmatpush1.msra.mxu0 0.0
          %387 = vmatprep.subr.mxu0 0.0
          %388 = vmatpush1.msra.mxu0 0.0
          %389 = vmatprep.subr.mxu0 0.0
          %390 = vmatpush1.msra.mxu0 0.0
          %391 = vmatprep.subr.mxu0 0.0
          %392 = vmatpush1.msra.mxu0 0.0
          %393 = vmatprep.subr.mxu0 0.0
          %394 = vmatpush1.msra.mxu0 0.0
          %395 = vmatprep.subr.mxu0 0.0
          %396 = vmatpush1.msra.mxu0 0.0
          %397 = vmatprep.subr.mxu0 0.0
          %398 = vmatpush1.msra.mxu0 0.0
          %399 = vmatprep.subr.mxu0 0.0
          %400 = vmatpush1.msra.mxu0 0.0
          %401 = vmatprep.subr.mxu0 0.0
          %402 = vmatpush1.msra.mxu0 0.0
          %403 = vmatprep.subr.mxu0 0.0
          %404 = vmatpush1.msra.mxu0 0.0
          %405 = vmatprep.subr.mxu0 0.0
          %406 = vmatpush1.msra.mxu0 0.0
          %407 = vmatprep.subr.mxu0 0.0
          %408 = vmatpush1.msra.mxu0 0.0
          %409 = vmatprep.subr.mxu0 0.0
          %410 = vmatpush1.msra.mxu0 0.0
          %411 = vmatprep.subr.mxu0 0.0
          %412 = vmatpush1.msra.mxu0 0.0
          %413 = vmatprep.subr.mxu0 0.0
          %414 = vmatpush1.msra.mxu0 0.0
          %415 = vmatprep.subr.mxu0 0.0
          %416 = vmatpush1.msra.mxu0 0.0
          %417 = vmatprep.subr.mxu0 0.0
          %418 = vmatpush1.msra.mxu0 0.0
          %419 = vmatprep.subr.mxu0 0.0
          %420 = vmatpush1.msra.mxu0 0.0
          %421 = vmatprep.subr.mxu0 0.0
          %422 = vmatpush1.msra.mxu0 0.0
          %423 = vmatprep.subr.mxu0 0.0
          %424 = vmatpush1.msra.mxu0 0.0
          %425 = vmatprep.subr.mxu0 0.0
          %426 = vmatpush1.msra.mxu0 0.0
          %427 = vmatprep.subr.mxu0 0.0
          %428 = vmatpush1.msra.mxu0 0.0
          %429 = vmatprep.subr.mxu0 0.0
          %430 = vmatpush1.msra.mxu0 0.0
          %431 = vmatprep.mubr.f32.mxu0 0.0
          %432 = vmatmul.mubr.f32.gmra.mrb[0].mxu0 %v365
          %v433 = vpop.f32.mrb[0].mxu0
          %v434 = vadd.f32 0.0, %v433
          %v435 = vpop.f32.mrb[0].mxu0
          %436 = vdwg.mxu0
          %s437 = smul.u32 %s352, 8
          %s438 = scalar_lea.vmem %s335, %s437 [#allocation10]
          %vm439 = vcmask 64512
          %440 = vst.msk [vmem:[%s438] sm:$0xff] %vm439, %v434
          %s441 = scalar_lea.vmem [#allocation7], %s357
          %v442 = vld [vmem:[%s441] sm:$0xff]
          %v443 = vld [vmem:[%s441 + $0x8] sm:$0xff]
          %v444 = vld [vmem:[%s441 + $0x10] sm:$0xff]
          %v445 = vld [vmem:[%s441 + $0x18] sm:$0xff]
          %446 = vmatprep.subr.mxu0 0.0
          %447 = vmatpush1.msra.mxu0 %v442
          %448 = vmatprep.subr.mxu0 0.0
          %449 = vmatpush1.msra.mxu0 %v443
          %450 = vmatprep.subr.mxu0 0.0
          %451 = vmatpush1.msra.mxu0 %v444
          %452 = vmatprep.subr.mxu0 0.0
          %453 = vmatpush1.msra.mxu0 %v445
          %454 = vmatprep.subr.mxu0 0.0
          %455 = vmatpush1.msra.mxu0 0.0
          %456 = vmatprep.subr.mxu0 0.0
          %457 = vmatpush1.msra.mxu0 0.0
          %458 = vmatprep.subr.mxu0 0.0
          %459 = vmatpush1.msra.mxu0 0.0
          %460 = vmatprep.subr.mxu0 0.0
          %461 = vmatpush1.msra.mxu0 0.0
          %462 = vmatprep.subr.mxu0 0.0
          %463 = vmatpush1.msra.mxu0 0.0
          %464 = vmatprep.subr.mxu0 0.0
          %465 = vmatpush1.msra.mxu0 0.0
          %466 = vmatprep.subr.mxu0 0.0
          %467 = vmatpush1.msra.mxu0 0.0
          %468 = vmatprep.subr.mxu0 0.0
          %469 = vmatpush1.msra.mxu0 0.0
          %470 = vmatprep.subr.mxu0 0.0
          %471 = vmatpush1.msra.mxu0 0.0
          %472 = vmatprep.subr.mxu0 0.0
          %473 = vmatpush1.msra.mxu0 0.0
          %474 = vmatprep.subr.mxu0 0.0
          %475 = vmatpush1.msra.mxu0 0.0
          %476 = vmatprep.subr.mxu0 0.0
          %477 = vmatpush1.msra.mxu0 0.0
          %478 = vmatprep.subr.mxu0 0.0
          %479 = vmatpush1.msra.mxu0 0.0
          %480 = vmatprep.subr.mxu0 0.0
          %481 = vmatpush1.msra.mxu0 0.0
          %482 = vmatprep.subr.mxu0 0.0
          %483 = vmatpush1.msra.mxu0 0.0
          %484 = vmatprep.subr.mxu0 0.0
          %485 = vmatpush1.msra.mxu0 0.0
          %486 = vmatprep.subr.mxu0 0.0
          %487 = vmatpush1.msra.mxu0 0.0
          %488 = vmatprep.subr.mxu0 0.0
          %489 = vmatpush1.msra.mxu0 0.0
          %490 = vmatprep.subr.mxu0 0.0
          %491 = vmatpush1.msra.mxu0 0.0
          %492 = vmatprep.subr.mxu0 0.0
          %493 = vmatpush1.msra.mxu0 0.0
          %494 = vmatprep.subr.mxu0 0.0
          %495 = vmatpush1.msra.mxu0 0.0
          %496 = vmatprep.subr.mxu0 0.0
          %497 = vmatpush1.msra.mxu0 0.0
          %498 = vmatprep.subr.mxu0 0.0
          %499 = vmatpush1.msra.mxu0 0.0
          %500 = vmatprep.subr.mxu0 0.0
          %501 = vmatpush1.msra.mxu0 0.0
          %502 = vmatprep.subr.mxu0 0.0
          %503 = vmatpush1.msra.mxu0 0.0
          %504 = vmatprep.subr.mxu0 0.0
          %505 = vmatpush1.msra.mxu0 0.0
          %506 = vmatprep.subr.mxu0 0.0
          %507 = vmatpush1.msra.mxu0 0.0
          %508 = vmatprep.subr.mxu0 0.0
          %509 = vmatpush1.msra.mxu0 0.0
          %510 = vmatprep.mubr.f32.mxu0 0.0
          %511 = vmatmul.mubr.f32.gmra.mrb[0].mxu0 %v365
          %v512 = vpop.f32.mrb[0].mxu0
          %v513 = vadd.f32 0.0, %v512
          %v514 = vpop.f32.mrb[0].mxu0
          %515 = vdwg.mxu0
          %s516 = scalar_lea.vmem %s342, %s437 [#allocation11]
          %517 = vst.msk [vmem:[%s516] sm:$0xff] %vm439, %v513
          %s518 = scalar_lea.vmem [#allocation8], %s357
          %v519 = vld [vmem:[%s518] sm:$0xff]
          %v520 = vld [vmem:[%s518 + $0x8] sm:$0xff]
          %v521 = vld [vmem:[%s518 + $0x10] sm:$0xff]
          %v522 = vld [vmem:[%s518 + $0x18] sm:$0xff]
          %523 = vmatprep.subr.mxu0 0.0
          %524 = vmatpush1.msra.mxu0 %v519
          %525 = vmatprep.subr.mxu0 0.0
          %526 = vmatpush1.msra.mxu0 %v520
          %527 = vmatprep.subr.mxu0 0.0
          %528 = vmatpush1.msra.mxu0 %v521
          %529 = vmatprep.subr.mxu0 0.0
          %530 = vmatpush1.msra.mxu0 %v522
          %531 = vmatprep.subr.mxu0 0.0
          %532 = vmatpush1.msra.mxu0 0.0
          %533 = vmatprep.subr.mxu0 0.0
          %534 = vmatpush1.msra.mxu0 0.0
          %535 = vmatprep.subr.mxu0 0.0
          %536 = vmatpush1.msra.mxu0 0.0
          %537 = vmatprep.subr.mxu0 0.0
          %538 = vmatpush1.msra.mxu0 0.0
          %539 = vmatprep.subr.mxu0 0.0
          %540 = vmatpush1.msra.mxu0 0.0
          %541 = vmatprep.subr.mxu0 0.0
          %542 = vmatpush1.msra.mxu0 0.0
          %543 = vmatprep.subr.mxu0 0.0
          %544 = vmatpush1.msra.mxu0 0.0
          %545 = vmatprep.subr.mxu0 0.0
          %546 = vmatpush1.msra.mxu0 0.0
          %547 = vmatprep.subr.mxu0 0.0
          %548 = vmatpush1.msra.mxu0 0.0
          %549 = vmatprep.subr.mxu0 0.0
          %550 = vmatpush1.msra.mxu0 0.0
          %551 = vmatprep.subr.mxu0 0.0
          %552 = vmatpush1.msra.mxu0 0.0
          %553 = vmatprep.subr.mxu0 0.0
          %554 = vmatpush1.msra.mxu0 0.0
          %555 = vmatprep.subr.mxu0 0.0
          %556 = vmatpush1.msra.mxu0 0.0
          %557 = vmatprep.subr.mxu0 0.0
          %558 = vmatpush1.msra.mxu0 0.0
          %559 = vmatprep.subr.mxu0 0.0
          %560 = vmatpush1.msra.mxu0 0.0
          %561 = vmatprep.subr.mxu0 0.0
          %562 = vmatpush1.msra.mxu0 0.0
          %563 = vmatprep.subr.mxu0 0.0
          %564 = vmatpush1.msra.mxu0 0.0
          %565 = vmatprep.subr.mxu0 0.0
          %566 = vmatpush1.msra.mxu0 0.0
          %567 = vmatprep.subr.mxu0 0.0
          %568 = vmatpush1.msra.mxu0 0.0
          %569 = vmatprep.subr.mxu0 0.0
          %570 = vmatpush1.msra.mxu0 0.0
          %571 = vmatprep.subr.mxu0 0.0
          %572 = vmatpush1.msra.mxu0 0.0
          %573 = vmatprep.subr.mxu0 0.0
          %574 = vmatpush1.msra.mxu0 0.0
          %575 = vmatprep.subr.mxu0 0.0
          %576 = vmatpush1.msra.mxu0 0.0
          %577 = vmatprep.subr.mxu0 0.0
          %578 = vmatpush1.msra.mxu0 0.0
          %579 = vmatprep.subr.mxu0 0.0
          %580 = vmatpush1.msra.mxu0 0.0
          %581 = vmatprep.subr.mxu0 0.0
          %582 = vmatpush1.msra.mxu0 0.0
          %583 = vmatprep.subr.mxu0 0.0
          %584 = vmatpush1.msra.mxu0 0.0
          %585 = vmatprep.subr.mxu0 0.0
          %586 = vmatpush1.msra.mxu0 0.0
          %587 = vmatprep.mubr.f32.mxu0 0.0
          %588 = vmatmul.mubr.f32.gmra.mrb[0].mxu0 %v365
          %v589 = vpop.f32.mrb[0].mxu0
          %v590 = vadd.f32 0.0, %v589
          %v591 = vpop.f32.mrb[0].mxu0
          %592 = vdwg.mxu0
          %s593 = scalar_lea.vmem %s349, %s437 [#allocation13]
          %594 = vst.msk [vmem:[%s593] sm:$0xff] %vm439, %v590
        $region57: #{tpu_custom_call.1} parent=35 // loop_footer
          %s356 = sadd.s32 1, %s352
        $region58: #{tpu_custom_call.1} parent=35 // loop_footer_branch
          %351 = sbr.rel target = $region54
        $region59: #{tpu_custom_call.1} parent=35 // loop_exit
          _
        %s595 = sand.u32 %s142, 1
        %s596 = scalar_lea.sflag [#allocation4], %s595
        %s597 = sand.u32 %s142, 1
        %s598 = smul.addr %s597, 32
        %s599 = scalar_lea.vmem [#allocation10], %s598
        %s600 = sand.u32 %s29, 1
        %s601 = scalar_lea.sflag [#allocation12], %s600
        %s602 = sand.u32 %s170, 1
        %s603 = smul.addr %s602, 32
        %s604 = scalar_lea.vmem [#allocation11], %s603
        %s605 = sand.u32 %s29, 1
        %s606 = scalar_lea.sflag [#allocation12], %s605
        %s607 = sand.u32 %s198, 1
        %s608 = smul.addr %s607, 32
        %s609 = scalar_lea.vmem [#allocation13], %s608
        // Predicated region
        $region60: #{tpu_custom_call.1} parent=35 // pred_check
          %p610 = pneg %p152
        $region61: #{tpu_custom_call.1} parent=35 // pred_check_branch
          %612 = sbr.rel (%p610) target = $region63
        $region62: #{tpu_custom_call.1} parent=35 // pred_region
          %s614 = ssub.s32 512, 512
          %615 = vsyncadd %s596, %s614
          %s616 = smul.addr %s33, 4
          %s617 = sadd.s32 %s34, %s616
          %s618 = smul.addr %s617, 128
          %s619 = scalar_lea.hbm %s4, %s618
          %s620 = sshll.u32 %s599, 4
          %s621 = int_to_ptr.vmem [resolvable:$true] %s620
          %626 = dma.vmem_to_hbm [thread:$0]  %s621, 512, %s619, %s596, 128, 128, 8
        $region63: #{tpu_custom_call.1} parent=35 // pred_fallthru
          _
        // Predicated region
        $region64: #{tpu_custom_call.1} parent=35 // pred_check
          %p627 = pneg %p180
        $region65: #{tpu_custom_call.1} parent=35 // pred_check_branch
          %629 = sbr.rel (%p627) target = $region67
        $region66: #{tpu_custom_call.1} parent=35 // pred_region
          %s631 = ssub.s32 512, 512
          %632 = vsyncadd %s601, %s631
          %s633 = smul.addr %s33, 4
          %s634 = sadd.s32 %s34, %s633
          %s635 = smul.addr %s634, 128
          %s636 = scalar_lea.hbm %s5, %s635
          %s637 = sshll.u32 %s604, 4
          %s638 = int_to_ptr.vmem [resolvable:$true] %s637
          %643 = dma.vmem_to_hbm [thread:$0]  %s638, 512, %s636, %s601, 128, 128, 8
        $region67: #{tpu_custom_call.1} parent=35 // pred_fallthru
          _
        // Predicated region
        $region68: #{tpu_custom_call.1} parent=35 // pred_check
          %p644 = pneg %p208
        $region69: #{tpu_custom_call.1} parent=35 // pred_check_branch
          %646 = sbr.rel (%p644) target = $region71
        $region70: #{tpu_custom_call.1} parent=35 // pred_region
          %s648 = ssub.s32 512, 512
          %649 = vsyncadd %s606, %s648
          %s650 = smul.addr %s33, 4
          %s651 = sadd.s32 %s34, %s650
          %s652 = smul.addr %s651, 128
          %s653 = scalar_lea.hbm %s6, %s652
          %s654 = sshll.u32 %s609, 4
          %s655 = int_to_ptr.vmem [resolvable:$true] %s654
          %660 = dma.vmem_to_hbm [thread:$0]  %s655, 512, %s653, %s606, 128, 128, 8
        $region71: #{tpu_custom_call.1} parent=35 // pred_fallthru
          _
      $region36: #{tpu_custom_call.1} parent=5 // pred_fallthru
        _
      %p661 = scmp.le.s32.totalorder 2, %s24
      // Predicated region
      $region72: #{tpu_custom_call.1} parent=5 // pred_check
        %p662 = pneg %p661
      $region73: #{tpu_custom_call.1} parent=5 // pred_check_branch
        %664 = sbr.rel (%p662) target = $region75
      $region74: #{tpu_custom_call.1} parent=5 // pred_region
        %s665 = ssub.s32 %s24, 2
        // Predicated region
        $region76: #{tpu_custom_call.1} parent=74 // pred_check
          %p666 = pneg %p158
        $region77: #{tpu_custom_call.1} parent=74 // pred_check_branch
          %668 = sbr.rel (%p666) target = $region79
        $region78: #{tpu_custom_call.1} parent=74 // pred_region
          %s669 = sand.u32 %s143, 1
          %s670 = scalar_lea.sflag [#allocation4], %s669
          %s671 = sand.u32 %s143, 1
          %s672 = smul.addr %s671, 32
          %s673 = scalar_lea.vmem [#allocation10], %s672
          %674 = dma.done %s670, 512
        $region79: #{tpu_custom_call.1} parent=74 // pred_fallthru
          _
        // Predicated region
        $region80: #{tpu_custom_call.1} parent=74 // pred_check
          %p675 = pneg %p186
        $region81: #{tpu_custom_call.1} parent=74 // pred_check_branch
          %677 = sbr.rel (%p675) target = $region83
        $region82: #{tpu_custom_call.1} parent=74 // pred_region
          %s678 = sand.u32 %s30, 1
          %s679 = scalar_lea.sflag [#allocation12], %s678
          %s680 = sand.u32 %s171, 1
          %s681 = smul.addr %s680, 32
          %s682 = scalar_lea.vmem [#allocation11], %s681
          %683 = dma.done %s679, 512
        $region83: #{tpu_custom_call.1} parent=74 // pred_fallthru
          _
        // Predicated region
        $region84: #{tpu_custom_call.1} parent=74 // pred_check
          %p684 = pneg %p214
        $region85: #{tpu_custom_call.1} parent=74 // pred_check_branch
          %686 = sbr.rel (%p684) target = $region87
        $region86: #{tpu_custom_call.1} parent=74 // pred_region
          %s687 = sand.u32 %s30, 1
          %s688 = scalar_lea.sflag [#allocation12], %s687
          %s689 = sand.u32 %s199, 1
          %s690 = smul.addr %s689, 32
          %s691 = scalar_lea.vmem [#allocation13], %s690
          %692 = dma.done %s688, 512
        $region87: #{tpu_custom_call.1} parent=74 // pred_fallthru
          _
      $region75: #{tpu_custom_call.1} parent=5 // pred_fallthru
        _
    $region6: #{tpu_custom_call.1} parent=1 // loop_footer
      %s28 = sadd.s32 1, %s24
    $region7: #{tpu_custom_call.1} parent=1 // loop_footer_branch
      %23 = sbr.rel target = $region3
    $region8: #{tpu_custom_call.1} parent=1 // loop_exit
      _
    %693 = vsyncpa [#allocation3], 1
    %s694 = scalar_lea.sflag [#allocation3], 1
    %695 = vsyncpa %s694, 1
    %696 = vsyncpa [#allocation6], 1
    %697 = vsyncpa [#allocation9], 1
    %698 = vsyncpa [#allocation4], 1
    %s699 = scalar_lea.sflag [#allocation4], 1
    %700 = vsyncpa %s699, 1
    %701 = vsyncpa [#allocation12], 1
    %s702 = scalar_lea.sflag [#allocation12], 1
    %703 = vsyncpa %s702, 1

</llo_original>
